<compile_context>
chip_gen: v5e
topology: v5e:2x2
jax: 0.10.0
libtpu: 0.0.40
codegen_flags: <defaults>
</compile_context>

<pallas_src>
import functools

import jax
import jax.numpy as jnp
import numpy as np
from jax.experimental import pallas as pl
from jax.experimental.pallas import tpu as pltpu

P = 128  # lane width; every feature dimension is zero-padded to P.


# ----------------------------- Pallas kernel --------------------------------


def _make_cvae_kernel(n_hidden: int, activation: str, use_bf16: bool):
    """Fused CVAE forward kernel.

    Weight-slab tile order:
      [0 .. n_hidden-1]              encoder layers (layer 0: rows 0:D = x,
                                     row D = condition, eps rows zero)
      [n_hidden]                     fc_mu      (cols at D+1 : D+1+L)
      [n_hidden+1]                   fc_logvar  (cols at D+1 : D+1+L, reparam)
      [n_hidden+2]                   fc_logvar  (cols at D+1+L : D+1+2L, out)
      [n_hidden+3 .. 2*n_hidden+2]   decoder layers (layer 0: row D = cond,
                                     rows D+1:D+1+L = z, x rows zeroed)
      [2*n_hidden+3]                 fc_out     (cols at 0:D)
    """

    def act(v):
        if activation == "relu":
            return jnp.maximum(v, 0.0)
        elif activation == "tanh":
            return jnp.tanh(v)
        elif activation == "leaky_relu":
            return jnp.where(v >= 0.0, v, 0.01 * v)
        elif activation == "sigmoid":
            return jax.nn.sigmoid(v)
        else:
            raise ValueError("Invalid activation function")

    def kernel(xin_ref, w_ref, b_ref, out_ref):
        xin = xin_ref[...]  # [tile_b, 128]: x | condition | eps | zeros

        def layer(h, idx):
            # static slices of the resident weight/bias slabs -> zero cost
            w = w_ref[idx * P:(idx + 1) * P, :]
            b = b_ref[idx:idx + 1, :]
            if use_bf16:
                h = h.astype(jnp.bfloat16)
                w = w.astype(jnp.bfloat16)
            return jnp.dot(h, w, preferred_element_type=jnp.float32) + b

        # ---- encoder: layer 0 eats the whole input block (eps lanes hit
        # zero-padded weight rows, so no masking needed) --------------------
        h = act(layer(xin, 0))
        for l in range(1, n_hidden):
            h = act(layer(h, l))

        mu = layer(h, n_hidden)            # value at lanes D+1 : D+1+L
        lv_rep = layer(h, n_hidden + 1)    # value at lanes D+1 : D+1+L
        lv_out = layer(h, n_hidden + 2)    # value at lanes D+1+L : D+1+2L

        # ---- reparameterize (f32) -----------------------------------------
        # Outside the z lanes: mu = lv_rep = 0 -> std = 1, so xin passes
        # through and carries x / condition to the decoder's repacked layer 0.
        z_blk = mu + xin * jnp.exp(0.5 * lv_rep)

        # ---- decoder (layer 0 weight rows re-homed: cond->D, z->D+1:D+1+L,
        # x passthrough rows zeroed) -----------------------------------------
        d = act(layer(z_blk, n_hidden + 3))
        for l in range(1, n_hidden):
            d = act(layer(d, n_hidden + 3 + l))
        recon = layer(d, 2 * n_hidden + 3)  # value at lanes 0:D

        # ---- single 128-lane output block: recon | mu | logvar (disjoint) --
        out_ref[...] = recon + mu + lv_out

    return kernel


# -------------------- one-time parameter packing (host side) ----------------


def pack_cvae_params(params, input_dim, latent_dim):
    """Pack all linear layers into one weight slab + one bias slab.

    Host-side numpy; call ONCE after init, NOT in the per-step path.
    """
    D = int(input_dim)
    L = int(latent_dim)
    n_hidden = len(params["enc"])
    assert D + 1 + 2 * L <= P, "single-lane-block layout needs D+1+2L <= 128"

    n_tiles = 2 * n_hidden + 4
    nb = ((n_tiles + 7) // 8) * 8
    w_slab = np.zeros((n_tiles * P, P), np.float32)
    b_slab = np.zeros((nb, P), np.float32)

    def place(idx, w, b, row_start=0, col_start=0):
        w = np.asarray(w, np.float32)
        b = np.asarray(b, np.float32)
        r, c = w.shape
        assert r + row_start <= P and c + col_start <= P, (
            "feature dims > 128 need multi-tile weight packing")
        w_slab[idx * P + row_start: idx * P + row_start + r,
               col_start: col_start + c] = w
        b_slab[idx, col_start: col_start + c] = b

    # encoder layers (layer 0 rows: 0:D = x, D = condition; eps rows stay 0)
    for l, (w, b) in enumerate(params["enc"]):
        place(l, w, b)

    # heads: mu + two copies of logvar (reparam-aligned and output-aligned)
    place(n_hidden, *params["mu"], col_start=D + 1)
    place(n_hidden + 1, *params["logvar"], col_start=D + 1)
    place(n_hidden + 2, *params["logvar"], col_start=D + 1 + L)

    # decoder layer 0: re-home rows (z -> D+1:D+1+L, condition -> D, x -> 0)
    w0, b0 = params["dec"][0]
    w0 = np.asarray(w0, np.float32)
    b0 = np.asarray(b0, np.float32)
    idx0 = n_hidden + 3
    h0 = w0.shape[1]
    assert w0.shape[0] == L + 1 and h0 <= P
    w_slab[idx0 * P + D + 1: idx0 * P + D + 1 + L, :h0] = w0[:L, :]
    w_slab[idx0 * P + D, :h0] = w0[L, :]
    b_slab[idx0, :h0] = b0

    for l in range(1, n_hidden):
        place(n_hidden + 3 + l, *params["dec"][l])

    place(2 * n_hidden + 3, *params["out"])

    return jnp.asarray(w_slab), jnp.asarray(b_slab)


# ------------------------------- forward -------------------------------------


@functools.partial(jax.jit, static_argnames=("activation", "tile_b", "use_bf16"))
def cvae_forward_pallas(x, condition, eps, w_slab, b_slab, activation,
                        tile_b=None, use_bf16=None):
    B, D = x.shape
    L = eps.shape[1]
    # correctness guard from review: the packing assumes a scalar condition
    assert condition.shape == (B, 1), "condition must have exactly one column"
    assert D + 1 + 2 * L <= P

    n_tiles = w_slab.shape[0] // P
    n_hidden = (n_tiles - 4) // 2

    if tile_b is None:
        b8 = ((B + 7) // 8) * 8
        if b8 <= 256:
            tile_b = b8                        # single tile, min launch cost
        else:
            # 512-row tiles ~85% of HBM roofline; keep grid >= 2 so both v7x
            # TensorCores get batch tiles via dimension_semantics.
            tile_b = min(512, ((b8 // 2 + 7) // 8) * 8)
    if use_bf16 is None:
        # bf16 matmul operands only pay off once the kernel is MXU-bound.
        # (v5e caveat: elementwise math stays f32 -- only the dot is cast.)
        use_bf16 = tile_b >= 256

    b_pad = ((B + tile_b - 1) // tile_b) * tile_b

    # single lane-dense [b_pad, 128] input slab: x | condition | eps | zeros
    xin = jnp.concatenate(
        [x.astype(jnp.float32), condition.astype(jnp.float32),
         eps.astype(jnp.float32)], axis=1)
    xin = jnp.pad(xin, ((0, b_pad - B), (0, P - (D + 1 + L))))

    kernel = _make_cvae_kernel(n_hidden, activation, use_bf16)

    out = pl.pallas_call(
        kernel,
        out_shape=jax.ShapeDtypeStruct((b_pad, P), jnp.float32),
        grid_spec=pltpu.PrefetchScalarGridSpec(
            num_scalar_prefetch=0,
            grid=(b_pad // tile_b,),
            in_specs=[
                # activations: batch-tiled, lane-dense single 128-lane block
                pl.BlockSpec((tile_b, P), lambda i: (i, 0)),
                # packed weights / biases: constant block index -> resident
                pl.BlockSpec(w_slab.shape, lambda i: (0, 0)),
                pl.BlockSpec(b_slab.shape, lambda i: (0, 0)),
            ],
            out_specs=pl.BlockSpec((tile_b, P), lambda i: (i, 0)),
        ),
        compiler_params=pltpu.CompilerParams(
            dimension_semantics=("parallel",)),
    )(xin, w_slab, b_slab)

    recon = out[:B, :D]
    mu = out[:B, D + 1:D + 1 + L]
    logvar = out[:B, D + 1 + L:D + 1 + 2 * L]
    return recon, mu, logvar


# -------------------------- parameter construction --------------------------


def _init_linear(key, in_dim, out_dim):
    """PyTorch nn.Linear-style uniform init, deterministic."""
    kw, kb = jax.random.split(key)
    bound = 1.0 / np.sqrt(in_dim)
    w = jax.random.uniform(kw, (in_dim, out_dim), jnp.float32, -bound, bound)
    b = jax.random.uniform(kb, (out_dim,), jnp.float32, -bound, bound)
    return w, b


def init_cvae_params(key, input_dim, hidden_sizes, latent_dim):
    n = len(hidden_sizes)
    keys = jax.random.split(key, 2 * n + 3)
    ki = iter(keys)

    enc = []
    in_dim = input_dim + 1          # encoder layer 0 acts on cat(x, c)
    for h in hidden_sizes:
        enc.append(_init_linear(next(ki), in_dim, h))
        in_dim = h

    mu_p = _init_linear(next(ki), hidden_sizes[-1], latent_dim)
    lv_p = _init_linear(next(ki), hidden_sizes[-1], latent_dim)

    dec = []
    in_dim = latent_dim + 1          # decoder layer 0 acts on cat(z, c)
    for h in reversed(hidden_sizes):
        dec.append(_init_linear(next(ki), in_dim, h))
        in_dim = h

    out_p = _init_linear(next(ki), hidden_sizes[0], input_dim)

    return {"enc": enc, "mu": mu_p, "logvar": lv_p, "dec": dec, "out": out_p}


# ---------------------------- pure-JAX reference -----------------------------


def cvae_forward_ref(x, condition, eps, params, activation):
    def act(v):
        if activation == "relu":
            return jnp.maximum(v, 0.0)
        if activation == "tanh":
            return jnp.tanh(v)
        if activation == "leaky_relu":
            return jnp.where(v >= 0.0, v, 0.01 * v)
        if activation == "sigmoid":
            return jax.nn.sigmoid(v)
        raise ValueError("Invalid activation function")

    h = jnp.concatenate([x, condition], axis=1)
    for w, b in params["enc"]:
        h = act(h @ w + b)
    mu = h @ params["mu"][0] + params["mu"][1]
    logvar = h @ params["logvar"][0] + params["logvar"][1]
    z = mu + eps * jnp.exp(0.5 * logvar)
    d = jnp.concatenate([z, condition], axis=1)
    for w, b in params["dec"]:
        d = act(d @ w + b)
    recon = d @ params["out"][0] + params["out"][1]
    return recon, mu, logvar


# ----------------------------------- main ------------------------------------


if __name__ == "__main__":
    batch = 8
    input_dim = 16
    hidden_sizes = [32, 16]
    latent_dim = 8
    activation = "relu"

    key = jax.random.PRNGKey(0)
    k_params, k_x, k_c, k_eps = jax.random.split(key, 4)

    params = init_cvae_params(k_params, input_dim, hidden_sizes, latent_dim)
    # Pack once at init time (hoisted out of the per-call path).
    w_slab, b_slab = pack_cvae_params(params, input_dim, latent_dim)

    x = jax.random.normal(k_x, (batch, input_dim), jnp.float32)
    condition = jax.random.normal(k_c, (batch, 1), jnp.float32)
    # eps corresponds to torch.randn_like(std) in reparameterize; generated
    # deterministically here and passed in so the kernel is reproducible.
    eps = jax.random.normal(k_eps, (batch, latent_dim), jnp.float32)

    recon, mu, logvar = cvae_forward_pallas(
        x, condition, eps, w_slab, b_slab, activation=activation)
    jax.block_until_ready((recon, mu, logvar))

    recon_r, mu_r, logvar_r = cvae_forward_ref(x, condition, eps, params, activation)
    np.testing.assert_allclose(np.asarray(mu), np.asarray(mu_r), rtol=5e-3, atol=5e-3)
    np.testing.assert_allclose(np.asarray(logvar), np.asarray(logvar_r), rtol=5e-3, atol=5e-3)
    np.testing.assert_allclose(np.asarray(recon), np.asarray(recon_r), rtol=5e-3, atol=5e-3)

    print("KERNEL_OK")
</pallas_src>

<mosaic_0001>
module attributes {stable_mosaic.version = 11 : i64} {
  func.func @kernel(%arg0: i32, %arg1: memref<8x128xf32, #tpu.memory_space<vmem>>, %arg2: memref<1024x128xf32, #tpu.memory_space<vmem>>, %arg3: memref<8x128xf32, #tpu.memory_space<vmem>>, %arg4: memref<8x128xf32, #tpu.memory_space<vmem>>) attributes {dimension_semantics = [#tpu.dimension_semantics<parallel>], iteration_bounds = array<i64: 1>, scalar_prefetch = 0 : i64, scratch_operands = 0 : i64, tpu.core_type = #tpu.core_type<tc>, window_params = [{transform_indices = @transform_0, window_bounds = array<i64: 8, 128>}, {pipeline_mode = #tpu.pipeline_mode<synchronous>, transform_indices = @transform_1, window_bounds = array<i64: 1024, 128>}, {pipeline_mode = #tpu.pipeline_mode<synchronous>, transform_indices = @transform_2, window_bounds = array<i64: 8, 128>}, {transform_indices = @transform_3, window_bounds = array<i64: 8, 128>}]} {
    %c0 = arith.constant 0 : index
    %c0_0 = arith.constant 0 : index
    %0 = vector.load %arg1[%c0, %c0_0] : memref<8x128xf32, #tpu.memory_space<vmem>>, vector<8x128xf32>
    %c0_1 = arith.constant 0 : index
    %c0_2 = arith.constant 0 : index
    %1 = vector.load %arg2[%c0_1, %c0_2] : memref<1024x128xf32, #tpu.memory_space<vmem>>, vector<128x128xf32>
    %c0_3 = arith.constant 0 : index
    %c0_4 = arith.constant 0 : index
    %2 = vector.load %arg3[%c0_3, %c0_4] : memref<8x128xf32, #tpu.memory_space<vmem>>, vector<1x128xf32>
    %cst = arith.constant dense<0.000000e+00> : vector<8x128xf32>
    %3 = tpu.matmul %0, %1, %cst {dimension_numbers = #tpu.dot_dimension_numbers<[1], [0], [0], [1], [0, 0, 1, 1], [], []>} : vector<8x128xf32>, vector<128x128xf32>, vector<8x128xf32> -> vector<8x128xf32>
    %4 = vector.broadcast %2 : vector<1x128xf32> to vector<8x128xf32>
    %5 = arith.addf %3, %4 : vector<8x128xf32>
    %cst_5 = arith.constant 0.000000e+00 : f32
    %6 = vector.broadcast %cst_5 : f32 to vector<8x128xf32>
    %7 = arith.maximumf %5, %6 : vector<8x128xf32>
    %c128 = arith.constant 128 : index
    %c0_6 = arith.constant 0 : index
    %8 = vector.load %arg2[%c128, %c0_6] : memref<1024x128xf32, #tpu.memory_space<vmem>>, vector<128x128xf32>
    %c1 = arith.constant 1 : index
    %c0_7 = arith.constant 0 : index
    %9 = vector.load %arg3[%c1, %c0_7] : memref<8x128xf32, #tpu.memory_space<vmem>>, vector<1x128xf32>
    %cst_8 = arith.constant dense<0.000000e+00> : vector<8x128xf32>
    %10 = tpu.matmul %7, %8, %cst_8 {dimension_numbers = #tpu.dot_dimension_numbers<[1], [0], [0], [1], [0, 0, 1, 1], [], []>} : vector<8x128xf32>, vector<128x128xf32>, vector<8x128xf32> -> vector<8x128xf32>
    %11 = vector.broadcast %9 : vector<1x128xf32> to vector<8x128xf32>
    %12 = arith.addf %10, %11 : vector<8x128xf32>
    %cst_9 = arith.constant 0.000000e+00 : f32
    %13 = vector.broadcast %cst_9 : f32 to vector<8x128xf32>
    %14 = arith.maximumf %12, %13 : vector<8x128xf32>
    %c256 = arith.constant 256 : index
    %c0_10 = arith.constant 0 : index
    %15 = vector.load %arg2[%c256, %c0_10] : memref<1024x128xf32, #tpu.memory_space<vmem>>, vector<128x128xf32>
    %c2 = arith.constant 2 : index
    %c0_11 = arith.constant 0 : index
    %16 = vector.load %arg3[%c2, %c0_11] : memref<8x128xf32, #tpu.memory_space<vmem>>, vector<1x128xf32>
    %cst_12 = arith.constant dense<0.000000e+00> : vector<8x128xf32>
    %17 = tpu.matmul %14, %15, %cst_12 {dimension_numbers = #tpu.dot_dimension_numbers<[1], [0], [0], [1], [0, 0, 1, 1], [], []>} : vector<8x128xf32>, vector<128x128xf32>, vector<8x128xf32> -> vector<8x128xf32>
    %18 = vector.broadcast %16 : vector<1x128xf32> to vector<8x128xf32>
    %19 = arith.addf %17, %18 : vector<8x128xf32>
    %c384 = arith.constant 384 : index
    %c0_13 = arith.constant 0 : index
    %20 = vector.load %arg2[%c384, %c0_13] : memref<1024x128xf32, #tpu.memory_space<vmem>>, vector<128x128xf32>
    %c3 = arith.constant 3 : index
    %c0_14 = arith.constant 0 : index
    %21 = vector.load %arg3[%c3, %c0_14] : memref<8x128xf32, #tpu.memory_space<vmem>>, vector<1x128xf32>
    %cst_15 = arith.constant dense<0.000000e+00> : vector<8x128xf32>
    %22 = tpu.matmul %14, %20, %cst_15 {dimension_numbers = #tpu.dot_dimension_numbers<[1], [0], [0], [1], [0, 0, 1, 1], [], []>} : vector<8x128xf32>, vector<128x128xf32>, vector<8x128xf32> -> vector<8x128xf32>
    %23 = vector.broadcast %21 : vector<1x128xf32> to vector<8x128xf32>
    %24 = arith.addf %22, %23 : vector<8x128xf32>
    %c512 = arith.constant 512 : index
    %c0_16 = arith.constant 0 : index
    %25 = vector.load %arg2[%c512, %c0_16] : memref<1024x128xf32, #tpu.memory_space<vmem>>, vector<128x128xf32>
    %c4 = arith.constant 4 : index
    %c0_17 = arith.constant 0 : index
    %26 = vector.load %arg3[%c4, %c0_17] : memref<8x128xf32, #tpu.memory_space<vmem>>, vector<1x128xf32>
    %cst_18 = arith.constant dense<0.000000e+00> : vector<8x128xf32>
    %27 = tpu.matmul %14, %25, %cst_18 {dimension_numbers = #tpu.dot_dimension_numbers<[1], [0], [0], [1], [0, 0, 1, 1], [], []>} : vector<8x128xf32>, vector<128x128xf32>, vector<8x128xf32> -> vector<8x128xf32>
    %28 = vector.broadcast %26 : vector<1x128xf32> to vector<8x128xf32>
    %29 = arith.addf %27, %28 : vector<8x128xf32>
    %cst_19 = arith.constant 5.000000e-01 : f32
    %30 = vector.broadcast %cst_19 : f32 to vector<8x128xf32>
    %31 = arith.mulf %30, %24 : vector<8x128xf32>
    %32 = math.exp %31 : vector<8x128xf32>
    %33 = arith.mulf %0, %32 : vector<8x128xf32>
    %34 = arith.addf %19, %33 : vector<8x128xf32>
    %c640 = arith.constant 640 : index
    %c0_20 = arith.constant 0 : index
    %35 = vector.load %arg2[%c640, %c0_20] : memref<1024x128xf32, #tpu.memory_space<vmem>>, vector<128x128xf32>
    %c5 = arith.constant 5 : index
    %c0_21 = arith.constant 0 : index
    %36 = vector.load %arg3[%c5, %c0_21] : memref<8x128xf32, #tpu.memory_space<vmem>>, vector<1x128xf32>
    %cst_22 = arith.constant dense<0.000000e+00> : vector<8x128xf32>
    %37 = tpu.matmul %34, %35, %cst_22 {dimension_numbers = #tpu.dot_dimension_numbers<[1], [0], [0], [1], [0, 0, 1, 1], [], []>} : vector<8x128xf32>, vector<128x128xf32>, vector<8x128xf32> -> vector<8x128xf32>
    %38 = vector.broadcast %36 : vector<1x128xf32> to vector<8x128xf32>
    %39 = arith.addf %37, %38 : vector<8x128xf32>
    %cst_23 = arith.constant 0.000000e+00 : f32
    %40 = vector.broadcast %cst_23 : f32 to vector<8x128xf32>
    %41 = arith.maximumf %39, %40 : vector<8x128xf32>
    %c768 = arith.constant 768 : index
    %c0_24 = arith.constant 0 : index
    %42 = vector.load %arg2[%c768, %c0_24] : memref<1024x128xf32, #tpu.memory_space<vmem>>, vector<128x128xf32>
    %c6 = arith.constant 6 : index
    %c0_25 = arith.constant 0 : index
    %43 = vector.load %arg3[%c6, %c0_25] : memref<8x128xf32, #tpu.memory_space<vmem>>, vector<1x128xf32>
    %cst_26 = arith.constant dense<0.000000e+00> : vector<8x128xf32>
    %44 = tpu.matmul %41, %42, %cst_26 {dimension_numbers = #tpu.dot_dimension_numbers<[1], [0], [0], [1], [0, 0, 1, 1], [], []>} : vector<8x128xf32>, vector<128x128xf32>, vector<8x128xf32> -> vector<8x128xf32>
    %45 = vector.broadcast %43 : vector<1x128xf32> to vector<8x128xf32>
    %46 = arith.addf %44, %45 : vector<8x128xf32>
    %cst_27 = arith.constant 0.000000e+00 : f32
    %47 = vector.broadcast %cst_27 : f32 to vector<8x128xf32>
    %48 = arith.maximumf %46, %47 : vector<8x128xf32>
    %c896 = arith.constant 896 : index
    %c0_28 = arith.constant 0 : index
    %49 = vector.load %arg2[%c896, %c0_28] : memref<1024x128xf32, #tpu.memory_space<vmem>>, vector<128x128xf32>
    %c7 = arith.constant 7 : index
    %c0_29 = arith.constant 0 : index
    %50 = vector.load %arg3[%c7, %c0_29] : memref<8x128xf32, #tpu.memory_space<vmem>>, vector<1x128xf32>
    %cst_30 = arith.constant dense<0.000000e+00> : vector<8x128xf32>
    %51 = tpu.matmul %48, %49, %cst_30 {dimension_numbers = #tpu.dot_dimension_numbers<[1], [0], [0], [1], [0, 0, 1, 1], [], []>} : vector<8x128xf32>, vector<128x128xf32>, vector<8x128xf32> -> vector<8x128xf32>
    %52 = vector.broadcast %50 : vector<1x128xf32> to vector<8x128xf32>
    %53 = arith.addf %51, %52 : vector<8x128xf32>
    %54 = arith.addf %53, %19 : vector<8x128xf32>
    %55 = arith.addf %54, %29 : vector<8x128xf32>
    %c0_31 = arith.constant 0 : index
    %c0_32 = arith.constant 0 : index
    %56 = vector.load %arg4[%c0_31, %c0_32] : memref<8x128xf32, #tpu.memory_space<vmem>>, vector<8x128xf32>
    tpu.vector_store %arg4[%c0_31, %c0_32], %55 {strides = array<i32>} : memref<8x128xf32, #tpu.memory_space<vmem>>, vector<8x128xf32>,
    return
  }
  func.func @transform_0(%arg0: i32) -> (i32, i32) {
    %c0_i32 = arith.constant 0 : i32
    %c0_i32_0 = arith.constant 0 : i32
    return %arg0, %c0_i32 : i32, i32
  }
  func.func @transform_1(%arg0: i32) -> (i32, i32) {
    %c0_i32 = arith.constant 0 : i32
    %c0_i32_0 = arith.constant 0 : i32
    %c0_i32_1 = arith.constant 0 : i32
    return %c0_i32, %c0_i32_0 : i32, i32
  }
  func.func @transform_2(%arg0: i32) -> (i32, i32) {
    %c0_i32 = arith.constant 0 : i32
    %c0_i32_0 = arith.constant 0 : i32
    %c0_i32_1 = arith.constant 0 : i32
    return %c0_i32, %c0_i32_0 : i32, i32
  }
  func.func @transform_3(%arg0: i32) -> (i32, i32) {
    %c0_i32 = arith.constant 0 : i32
    %c0_i32_0 = arith.constant 0 : i32
    return %arg0, %c0_i32 : i32, i32
  }
}

</mosaic_0001>

<llo_original>
// kernel: cvae_forward_pallas.1
$region0: #{cvae_forward_pallas.1}
  #allocation0 [shape = 'u32[]', space=smem, size = 0x4, offset = 0x4, fixed_abs, tag = 'smem constant byte address 0x4 - core index']
  #allocation1 [shape = 'u32[72,128]{1,0:T(1,128)}', space=vmem, size = 0x9000, scoped, tag = 'internal scratch']
  %s0 = inlined_call_operand.vmem [shape: f32[8,128], index: 0, kind: input, shape index: {}]
  %s1 = inlined_call_operand.hbm [shape: f32[1024,128], index: 1, kind: input, shape index: {}]
  %s2 = inlined_call_operand.vmem [shape: f32[8,128], index: 2, kind: input, shape index: {}]
  %s3 = inlined_call_operand.vmem [shape: f32[8,128], index: 3, kind: output, shape index: {}]
  %s4 = sld [smem:[#allocation0]]
  $region26: #{cvae_forward_pallas.1} parent=0
    _
  %s6 = ssub.s32 1, %s4
  %s7 = scalar_select 0, %s6, %s4
  $region1: #{cvae_forward_pallas.1} parent=0
    #allocation2 [shape = 'u8[524288]{0}', space=vmem, size = 0x80000, scoped, tag = 'input window, operand 1, single buffered']
    #allocation3 [shape = 's32[1]{0}', space=sflag, size = 0x4, scoped, tag = 'scoped memory for cvae_forward_pallas.1']
    %8 = vsyncpa [#allocation3], 0
    // Predicated region
    $region2: #{cvae_forward_pallas.1} parent=1 // pred_check
      _
    $region3: #{cvae_forward_pallas.1} parent=1 // pred_check_branch
      %10 = sbr.rel (0) target = $region5
    $region4: #{cvae_forward_pallas.1} parent=1 // pred_region
      _
    $region5: #{cvae_forward_pallas.1} parent=1 // pred_fallthru
      _
    // Predicated region
    $region6: #{cvae_forward_pallas.1} parent=1 // pred_check
      _
    $region7: #{cvae_forward_pallas.1} parent=1 // pred_check_branch
      %12 = sbr.rel (0) target = $region9
    $region8: #{cvae_forward_pallas.1} parent=1 // pred_region
      %14 = vsyncadd [#allocation3], 0
      %s15 = sshll.u32 %s1, 4
      %s16 = int_to_ptr.hbm [resolvable:$true] %s15
      %s17 = sshll.u32 [#allocation2], 4
      %s18 = int_to_ptr.vmem [resolvable:$true] %s17
      %23 = dma.hbm_to_vmem [thread:$0]  %s16, 16384, %s18, [#allocation3], 128, 128, 8
    $region9: #{cvae_forward_pallas.1} parent=1 // pred_fallthru
      _
    // Predicated region
    $region10: #{cvae_forward_pallas.1} parent=1 // pred_check
      _
    $region11: #{cvae_forward_pallas.1} parent=1 // pred_check_branch
      %25 = sbr.rel (0) target = $region13
    $region12: #{cvae_forward_pallas.1} parent=1 // pred_region
      _
    $region13: #{cvae_forward_pallas.1} parent=1 // pred_fallthru
      _
    // Predicated region
    $region14: #{cvae_forward_pallas.1} parent=1 // pred_check
      _
    $region15: #{cvae_forward_pallas.1} parent=1 // pred_check_branch
      %27 = sbr.rel (0) target = $region17
    $region16: #{cvae_forward_pallas.1} parent=1 // pred_region
      %29 = dma.done [#allocation3], 16384
    $region17: #{cvae_forward_pallas.1} parent=1 // pred_fallthru
      _
    %v30 = vld [vmem:[%s0] sm:$0xff]
    %v31 = vld [vmem:[#allocation2] sm:$0xff]
    %v32 = vld [vmem:[#allocation2 + $0x8] sm:$0xff]
    %v33 = vld [vmem:[#allocation2 + $0x10] sm:$0xff]
    %v34 = vld [vmem:[#allocation2 + $0x18] sm:$0xff]
    %v35 = vld [vmem:[#allocation2 + $0x20] sm:$0xff]
    %v36 = vld [vmem:[#allocation2 + $0x28] sm:$0xff]
    %v37 = vld [vmem:[#allocation2 + $0x30] sm:$0xff]
    %v38 = vld [vmem:[#allocation2 + $0x38] sm:$0xff]
    %v39 = vld [vmem:[#allocation2 + $0x40] sm:$0xff]
    %v40 = vld [vmem:[#allocation2 + $0x48] sm:$0xff]
    %v41 = vld [vmem:[#allocation2 + $0x50] sm:$0xff]
    %v42 = vld [vmem:[#allocation2 + $0x58] sm:$0xff]
    %v43 = vld [vmem:[#allocation2 + $0x60] sm:$0xff]
    %v44 = vld [vmem:[#allocation2 + $0x68] sm:$0xff]
    %v45 = vld [vmem:[#allocation2 + $0x70] sm:$0xff]
    %v46 = vld [vmem:[#allocation2 + $0x78] sm:$0xff]
    %v47 = vld [vmem:[%s2] sm:$0x1]
    %v48 = vperm.slane %v47, 0
    %49 = vmatpush.msra.mxu0 %v46
    %50 = vmatpush.msra.mxu0 %v45
    %51 = vmatpush.msra.mxu0 %v44
    %52 = vmatpush.msra.mxu0 %v43
    %53 = vmatpush.msra.mxu0 %v42
    %54 = vmatpush.msra.mxu0 %v41
    %55 = vmatpush.msra.mxu0 %v40
    %56 = vmatpush.msra.mxu0 %v39
    %57 = vmatpush.msra.mxu0 %v38
    %58 = vmatpush.msra.mxu0 %v37
    %59 = vmatpush.msra.mxu0 %v36
    %60 = vmatpush.msra.mxu0 %v35
    %61 = vmatpush.msra.mxu0 %v34
    %62 = vmatpush.msra.mxu0 %v33
    %63 = vmatpush.msra.mxu0 %v32
    %64 = vmatpush.msra.mxu0 %v31
    %65 = vmatmul.f32.gmra.mxu0 %v30
    %v66 = vpop.f32.mrf.mxu0
    %v67 = vadd.f32 %v48, %v66
    %68 = vdwg.mxu0
    %v69 = vmax.f32 %v67, 0.0
    %v70 = vld [vmem:[#allocation2 + $0x80] sm:$0xff]
    %v71 = vld [vmem:[#allocation2 + $0x88] sm:$0xff]
    %v72 = vld [vmem:[#allocation2 + $0x90] sm:$0xff]
    %v73 = vld [vmem:[#allocation2 + $0x98] sm:$0xff]
    %v74 = vld [vmem:[#allocation2 + $0xa0] sm:$0xff]
    %v75 = vld [vmem:[#allocation2 + $0xa8] sm:$0xff]
    %v76 = vld [vmem:[#allocation2 + $0xb0] sm:$0xff]
    %v77 = vld [vmem:[#allocation2 + $0xb8] sm:$0xff]
    %v78 = vld [vmem:[#allocation2 + $0xc0] sm:$0xff]
    %v79 = vld [vmem:[#allocation2 + $0xc8] sm:$0xff]
    %v80 = vld [vmem:[#allocation2 + $0xd0] sm:$0xff]
    %v81 = vld [vmem:[#allocation2 + $0xd8] sm:$0xff]
    %v82 = vld [vmem:[#allocation2 + $0xe0] sm:$0xff]
    %v83 = vld [vmem:[#allocation2 + $0xe8] sm:$0xff]
    %v84 = vld [vmem:[#allocation2 + $0xf0] sm:$0xff]
    %v85 = vld [vmem:[#allocation2 + $0xf8] sm:$0xff]
    %v86 = vld [vmem:[%s2 + $0x1] sm:$0x1]
    %v87 = vperm.slane %v86, 0
    %88 = vmatpush.msra.mxu0 %v85
    %89 = vmatpush.msra.mxu0 %v84
    %90 = vmatpush.msra.mxu0 %v83
    %91 = vmatpush.msra.mxu0 %v82
    %92 = vmatpush.msra.mxu0 %v81
    %93 = vmatpush.msra.mxu0 %v80
    %94 = vmatpush.msra.mxu0 %v79
    %95 = vmatpush.msra.mxu0 %v78
    %96 = vmatpush.msra.mxu0 %v77
    %97 = vmatpush.msra.mxu0 %v76
    %98 = vmatpush.msra.mxu0 %v75
    %99 = vmatpush.msra.mxu0 %v74
    %100 = vmatpush.msra.mxu0 %v73
    %101 = vmatpush.msra.mxu0 %v72
    %102 = vmatpush.msra.mxu0 %v71
    %103 = vmatpush.msra.mxu0 %v70
    %104 = vmatmul.f32.gmra.mxu0 %v69
    %v105 = vpop.f32.mrf.mxu0
    %v106 = vadd.f32 %v87, %v105
    %107 = vdwg.mxu0
    %v108 = vmax.f32 %v106, 0.0
    %v109 = vld [vmem:[#allocation2 + $0x100] sm:$0xff]
    %v110 = vld [vmem:[#allocation2 + $0x108] sm:$0xff]
    %v111 = vld [vmem:[#allocation2 + $0x110] sm:$0xff]
    %v112 = vld [vmem:[#allocation2 + $0x118] sm:$0xff]
    %v113 = vld [vmem:[#allocation2 + $0x120] sm:$0xff]
    %v114 = vld [vmem:[#allocation2 + $0x128] sm:$0xff]
    %v115 = vld [vmem:[#allocation2 + $0x130] sm:$0xff]
    %v116 = vld [vmem:[#allocation2 + $0x138] sm:$0xff]
    %v117 = vld [vmem:[#allocation2 + $0x140] sm:$0xff]
    %v118 = vld [vmem:[#allocation2 + $0x148] sm:$0xff]
    %v119 = vld [vmem:[#allocation2 + $0x150] sm:$0xff]
    %v120 = vld [vmem:[#allocation2 + $0x158] sm:$0xff]
    %v121 = vld [vmem:[#allocation2 + $0x160] sm:$0xff]
    %v122 = vld [vmem:[#allocation2 + $0x168] sm:$0xff]
    %v123 = vld [vmem:[#allocation2 + $0x170] sm:$0xff]
    %v124 = vld [vmem:[#allocation2 + $0x178] sm:$0xff]
    %v125 = vld [vmem:[%s2 + $0x2] sm:$0x1]
    %v126 = vperm.slane %v125, 0
    %127 = vmatpush.msra.mxu0 %v124
    %128 = vmatpush.msra.mxu0 %v123
    %129 = vmatpush.msra.mxu0 %v122
    %130 = vmatpush.msra.mxu0 %v121
    %131 = vmatpush.msra.mxu0 %v120
    %132 = vmatpush.msra.mxu0 %v119
    %133 = vmatpush.msra.mxu0 %v118
    %134 = vmatpush.msra.mxu0 %v117
    %135 = vmatpush.msra.mxu0 %v116
    %136 = vmatpush.msra.mxu0 %v115
    %137 = vmatpush.msra.mxu0 %v114
    %138 = vmatpush.msra.mxu0 %v113
    %139 = vmatpush.msra.mxu0 %v112
    %140 = vmatpush.msra.mxu0 %v111
    %141 = vmatpush.msra.mxu0 %v110
    %142 = vmatpush.msra.mxu0 %v109
    %143 = vmatmul.f32.gmra.mxu0 %v108
    %v144 = vpop.f32.mrf.mxu0
    %v145 = vadd.f32 %v126, %v144
    %146 = vdwg.mxu0
    %v147 = vld [vmem:[#allocation2 + $0x180] sm:$0xff]
    %v148 = vld [vmem:[#allocation2 + $0x188] sm:$0xff]
    %v149 = vld [vmem:[#allocation2 + $0x190] sm:$0xff]
    %v150 = vld [vmem:[#allocation2 + $0x198] sm:$0xff]
    %v151 = vld [vmem:[#allocation2 + $0x1a0] sm:$0xff]
    %v152 = vld [vmem:[#allocation2 + $0x1a8] sm:$0xff]
    %v153 = vld [vmem:[#allocation2 + $0x1b0] sm:$0xff]
    %v154 = vld [vmem:[#allocation2 + $0x1b8] sm:$0xff]
    %v155 = vld [vmem:[#allocation2 + $0x1c0] sm:$0xff]
    %v156 = vld [vmem:[#allocation2 + $0x1c8] sm:$0xff]
    %v157 = vld [vmem:[#allocation2 + $0x1d0] sm:$0xff]
    %v158 = vld [vmem:[#allocation2 + $0x1d8] sm:$0xff]
    %v159 = vld [vmem:[#allocation2 + $0x1e0] sm:$0xff]
    %v160 = vld [vmem:[#allocation2 + $0x1e8] sm:$0xff]
    %v161 = vld [vmem:[#allocation2 + $0x1f0] sm:$0xff]
    %v162 = vld [vmem:[#allocation2 + $0x1f8] sm:$0xff]
    %v163 = vld [vmem:[%s2 + $0x3] sm:$0x1]
    %v164 = vperm.slane %v163, 0
    %165 = vmatpush.msra.mxu0 %v162
    %166 = vmatpush.msra.mxu0 %v161
    %167 = vmatpush.msra.mxu0 %v160
    %168 = vmatpush.msra.mxu0 %v159
    %169 = vmatpush.msra.mxu0 %v158
    %170 = vmatpush.msra.mxu0 %v157
    %171 = vmatpush.msra.mxu0 %v156
    %172 = vmatpush.msra.mxu0 %v155
    %173 = vmatpush.msra.mxu0 %v154
    %174 = vmatpush.msra.mxu0 %v153
    %175 = vmatpush.msra.mxu0 %v152
    %176 = vmatpush.msra.mxu0 %v151
    %177 = vmatpush.msra.mxu0 %v150
    %178 = vmatpush.msra.mxu0 %v149
    %179 = vmatpush.msra.mxu0 %v148
    %180 = vmatpush.msra.mxu0 %v147
    %181 = vmatmul.f32.gmra.mxu0 %v108
    %v182 = vpop.f32.mrf.mxu0
    %v183 = vadd.f32 %v164, %v182
    %184 = vdwg.mxu0
    %v185 = vld [vmem:[#allocation2 + $0x200] sm:$0xff]
    %v186 = vld [vmem:[#allocation2 + $0x208] sm:$0xff]
    %v187 = vld [vmem:[#allocation2 + $0x210] sm:$0xff]
    %v188 = vld [vmem:[#allocation2 + $0x218] sm:$0xff]
    %v189 = vld [vmem:[#allocation2 + $0x220] sm:$0xff]
    %v190 = vld [vmem:[#allocation2 + $0x228] sm:$0xff]
    %v191 = vld [vmem:[#allocation2 + $0x230] sm:$0xff]
    %v192 = vld [vmem:[#allocation2 + $0x238] sm:$0xff]
    %v193 = vld [vmem:[#allocation2 + $0x240] sm:$0xff]
    %v194 = vld [vmem:[#allocation2 + $0x248] sm:$0xff]
    %v195 = vld [vmem:[#allocation2 + $0x250] sm:$0xff]
    %v196 = vld [vmem:[#allocation2 + $0x258] sm:$0xff]
    %v197 = vld [vmem:[#allocation2 + $0x260] sm:$0xff]
    %v198 = vld [vmem:[#allocation2 + $0x268] sm:$0xff]
    %v199 = vld [vmem:[#allocation2 + $0x270] sm:$0xff]
    %v200 = vld [vmem:[#allocation2 + $0x278] sm:$0xff]
    %v201 = vld [vmem:[%s2 + $0x4] sm:$0x1]
    %v202 = vperm.slane %v201, 0
    %203 = vmatpush.msra.mxu0 %v200
    %204 = vmatpush.msra.mxu0 %v199
    %205 = vmatpush.msra.mxu0 %v198
    %206 = vmatpush.msra.mxu0 %v197
    %207 = vmatpush.msra.mxu0 %v196
    %208 = vmatpush.msra.mxu0 %v195
    %209 = vmatpush.msra.mxu0 %v194
    %210 = vmatpush.msra.mxu0 %v193
    %211 = vmatpush.msra.mxu0 %v192
    %212 = vmatpush.msra.mxu0 %v191
    %213 = vmatpush.msra.mxu0 %v190
    %214 = vmatpush.msra.mxu0 %v189
    %215 = vmatpush.msra.mxu0 %v188
    %216 = vmatpush.msra.mxu0 %v187
    %217 = vmatpush.msra.mxu0 %v186
    %218 = vmatpush.msra.mxu0 %v185
    %219 = vmatmul.f32.gmra.mxu0 %v108
    %v220 = vpop.f32.mrf.mxu0
    %v221 = vadd.f32 %v202, %v220
    %222 = vdwg.mxu0
    %v223 = vmul.f32 %v183, 0.5
    %v224 = vmul.f32 %v223, 1.442695
    %v225 = vpow.pop %v224
    %v226 = vmul.f32 %v30, %v225
    %v227 = vadd.f32 %v145, %v226
    %v228 = vld [vmem:[#allocation2 + $0x280] sm:$0xff]
    %v229 = vld [vmem:[#allocation2 + $0x288] sm:$0xff]
    %v230 = vld [vmem:[#allocation2 + $0x290] sm:$0xff]
    %v231 = vld [vmem:[#allocation2 + $0x298] sm:$0xff]
    %v232 = vld [vmem:[#allocation2 + $0x2a0] sm:$0xff]
    %v233 = vld [vmem:[#allocation2 + $0x2a8] sm:$0xff]
    %v234 = vld [vmem:[#allocation2 + $0x2b0] sm:$0xff]
    %v235 = vld [vmem:[#allocation2 + $0x2b8] sm:$0xff]
    %v236 = vld [vmem:[#allocation2 + $0x2c0] sm:$0xff]
    %v237 = vld [vmem:[#allocation2 + $0x2c8] sm:$0xff]
    %v238 = vld [vmem:[#allocation2 + $0x2d0] sm:$0xff]
    %v239 = vld [vmem:[#allocation2 + $0x2d8] sm:$0xff]
    %v240 = vld [vmem:[#allocation2 + $0x2e0] sm:$0xff]
    %v241 = vld [vmem:[#allocation2 + $0x2e8] sm:$0xff]
    %v242 = vld [vmem:[#allocation2 + $0x2f0] sm:$0xff]
    %v243 = vld [vmem:[#allocation2 + $0x2f8] sm:$0xff]
    %v244 = vld [vmem:[%s2 + $0x5] sm:$0x1]
    %v245 = vperm.slane %v244, 0
    %246 = vmatpush.msra.mxu0 %v243
    %247 = vmatpush.msra.mxu0 %v242
    %248 = vmatpush.msra.mxu0 %v241
    %249 = vmatpush.msra.mxu0 %v240
    %250 = vmatpush.msra.mxu0 %v239
    %251 = vmatpush.msra.mxu0 %v238
    %252 = vmatpush.msra.mxu0 %v237
    %253 = vmatpush.msra.mxu0 %v236
    %254 = vmatpush.msra.mxu0 %v235
    %255 = vmatpush.msra.mxu0 %v234
    %256 = vmatpush.msra.mxu0 %v233
    %257 = vmatpush.msra.mxu0 %v232
    %258 = vmatpush.msra.mxu0 %v231
    %259 = vmatpush.msra.mxu0 %v230
    %260 = vmatpush.msra.mxu0 %v229
    %261 = vmatpush.msra.mxu0 %v228
    %262 = vmatmul.f32.gmra.mxu0 %v227
    %v263 = vpop.f32.mrf.mxu0
    %v264 = vadd.f32 %v245, %v263
    %265 = vdwg.mxu0
    %v266 = vmax.f32 %v264, 0.0
    %v267 = vld [vmem:[#allocation2 + $0x300] sm:$0xff]
    %v268 = vld [vmem:[#allocation2 + $0x308] sm:$0xff]
    %v269 = vld [vmem:[#allocation2 + $0x310] sm:$0xff]
    %v270 = vld [vmem:[#allocation2 + $0x318] sm:$0xff]
    %v271 = vld [vmem:[#allocation2 + $0x320] sm:$0xff]
    %v272 = vld [vmem:[#allocation2 + $0x328] sm:$0xff]
    %v273 = vld [vmem:[#allocation2 + $0x330] sm:$0xff]
    %v274 = vld [vmem:[#allocation2 + $0x338] sm:$0xff]
    %v275 = vld [vmem:[#allocation2 + $0x340] sm:$0xff]
    %v276 = vld [vmem:[#allocation2 + $0x348] sm:$0xff]
    %v277 = vld [vmem:[#allocation2 + $0x350] sm:$0xff]
    %v278 = vld [vmem:[#allocation2 + $0x358] sm:$0xff]
    %v279 = vld [vmem:[#allocation2 + $0x360] sm:$0xff]
    %v280 = vld [vmem:[#allocation2 + $0x368] sm:$0xff]
    %v281 = vld [vmem:[#allocation2 + $0x370] sm:$0xff]
    %v282 = vld [vmem:[#allocation2 + $0x378] sm:$0xff]
    %v283 = vld [vmem:[%s2 + $0x6] sm:$0x1]
    %v284 = vperm.slane %v283, 0
    %285 = vmatpush.msra.mxu0 %v282
    %286 = vmatpush.msra.mxu0 %v281
    %287 = vmatpush.msra.mxu0 %v280
    %288 = vmatpush.msra.mxu0 %v279
    %289 = vmatpush.msra.mxu0 %v278
    %290 = vmatpush.msra.mxu0 %v277
    %291 = vmatpush.msra.mxu0 %v276
    %292 = vmatpush.msra.mxu0 %v275
    %293 = vmatpush.msra.mxu0 %v274
    %294 = vmatpush.msra.mxu0 %v273
    %295 = vmatpush.msra.mxu0 %v272
    %296 = vmatpush.msra.mxu0 %v271
    %297 = vmatpush.msra.mxu0 %v270
    %298 = vmatpush.msra.mxu0 %v269
    %299 = vmatpush.msra.mxu0 %v268
    %300 = vmatpush.msra.mxu0 %v267
    %301 = vmatmul.f32.gmra.mxu0 %v266
    %v302 = vpop.f32.mrf.mxu0
    %v303 = vadd.f32 %v284, %v302
    %304 = vdwg.mxu0
    %v305 = vmax.f32 %v303, 0.0
    %v306 = vld [vmem:[#allocation2 + $0x380] sm:$0xff]
    %v307 = vld [vmem:[#allocation2 + $0x388] sm:$0xff]
    %v308 = vld [vmem:[#allocation2 + $0x390] sm:$0xff]
    %v309 = vld [vmem:[#allocation2 + $0x398] sm:$0xff]
    %v310 = vld [vmem:[#allocation2 + $0x3a0] sm:$0xff]
    %v311 = vld [vmem:[#allocation2 + $0x3a8] sm:$0xff]
    %v312 = vld [vmem:[#allocation2 + $0x3b0] sm:$0xff]
    %v313 = vld [vmem:[#allocation2 + $0x3b8] sm:$0xff]
    %v314 = vld [vmem:[#allocation2 + $0x3c0] sm:$0xff]
    %v315 = vld [vmem:[#allocation2 + $0x3c8] sm:$0xff]
    %v316 = vld [vmem:[#allocation2 + $0x3d0] sm:$0xff]
    %v317 = vld [vmem:[#allocation2 + $0x3d8] sm:$0xff]
    %v318 = vld [vmem:[#allocation2 + $0x3e0] sm:$0xff]
    %v319 = vld [vmem:[#allocation2 + $0x3e8] sm:$0xff]
    %v320 = vld [vmem:[#allocation2 + $0x3f0] sm:$0xff]
    %v321 = vld [vmem:[#allocation2 + $0x3f8] sm:$0xff]
    %v322 = vld [vmem:[%s2 + $0x7] sm:$0x1]
    %v323 = vperm.slane %v322, 0
    %324 = vmatpush.msra.mxu0 %v321
    %325 = vmatpush.msra.mxu0 %v320
    %326 = vmatpush.msra.mxu0 %v319
    %327 = vmatpush.msra.mxu0 %v318
    %328 = vmatpush.msra.mxu0 %v317
    %329 = vmatpush.msra.mxu0 %v316
    %330 = vmatpush.msra.mxu0 %v315
    %331 = vmatpush.msra.mxu0 %v314
    %332 = vmatpush.msra.mxu0 %v313
    %333 = vmatpush.msra.mxu0 %v312
    %334 = vmatpush.msra.mxu0 %v311
    %335 = vmatpush.msra.mxu0 %v310
    %336 = vmatpush.msra.mxu0 %v309
    %337 = vmatpush.msra.mxu0 %v308
    %338 = vmatpush.msra.mxu0 %v307
    %339 = vmatpush.msra.mxu0 %v306
    %340 = vmatmul.f32.gmra.mxu0 %v305
    %v341 = vpop.f32.mrf.mxu0
    %v342 = vadd.f32 %v323, %v341
    %343 = vdwg.mxu0
    %v344 = vadd.f32 %v342, %v145
    %v345 = vadd.f32 %v344, %v221
    %346 = vst [vmem:[%s3] sm:$0xff] %v345
    // Predicated region
    $region18: #{cvae_forward_pallas.1} parent=1 // pred_check
      _
    $region19: #{cvae_forward_pallas.1} parent=1 // pred_check_branch
      %348 = sbr.rel (0) target = $region21
    $region20: #{cvae_forward_pallas.1} parent=1 // pred_region
      _
    $region21: #{cvae_forward_pallas.1} parent=1 // pred_fallthru
      _
    // Predicated region
    $region22: #{cvae_forward_pallas.1} parent=1 // pred_check
      _
    $region23: #{cvae_forward_pallas.1} parent=1 // pred_check_branch
      %350 = sbr.rel (0) target = $region25
    $region24: #{cvae_forward_pallas.1} parent=1 // pred_region
      _
    $region25: #{cvae_forward_pallas.1} parent=1 // pred_fallthru
      _
    %351 = vsyncpa [#allocation3], 1

</llo_original>
